<compile_context>
chip_gen: v7x
topology: tpu7x:2x2x1
jax: 0.10.0
libtpu: 0.0.40
codegen_flags: <defaults>
</compile_context>

<pallas_src>
import math
import functools

import jax
import jax.numpy as jnp
from jax import lax
from jax.experimental import pallas as pl
from jax.experimental.pallas import tpu as pltpu


# ----------------------------------------------------------------------------
# Tiling / hardware helpers
# ----------------------------------------------------------------------------
def _pick_tile(dim, pref):
    """Largest divisor of `dim` that is <= `pref`, preferring lane-aligned
    (multiple-of-128) tiles.  Never falls back to the full dimension unless
    dim <= pref, so non-divisible real-model shapes keep small blocks and a
    live grid axis instead of one giant block."""
    if dim <= pref:
        return dim
    first = None
    for cand in range(pref, 0, -1):
        if dim % cand:
            continue
        if cand % 128 == 0:
            return cand
        if first is None:
            first = cand
    return first if first is not None else dim


@functools.lru_cache(maxsize=None)
def _hw_config():
    """Per-generation defaults.  v7x has only 64 MiB physical VMEM per core,
    v5e/v6e have 128 MiB — derive the scoped-VMEM budget and tile preferences
    from the actual chip instead of hard-coding one size."""
    vmem_cap = 64 * 1024 * 1024
    try:
        info_fn = getattr(pltpu, "get_tpu_info", None)
        if info_fn is not None:
            vmem_cap = int(info_fn().vmem_capacity_bytes)
    except Exception:
        pass
    big_vmem = vmem_cap >= 96 * 1024 * 1024          # v5e / v6e (128 MiB)
    return {
        "vmem_limit": (64 if big_vmem else 40) * 1024 * 1024,
        "lin_tm": 512,
        "lin_tn": 512 if big_vmem else 256,
        "lin_tk": 512 if big_vmem else 256,          # fewer k-steps where VMEM allows
        "attn_tq": 512,                              # big Q tile: K/V re-reads ~ S/tq
        "attn_tkv": 256,
    }


# ----------------------------------------------------------------------------
# Kernel 1: Conv1D (linear):  (M, K) @ (K, N) + bias, tiled, f32 accumulator
# ----------------------------------------------------------------------------
def _linear_kernel(x_ref, w_ref, b_ref, o_ref, acc_ref, *, mxu_dtype):
    k = pl.program_id(2)

    @pl.when(k == 0)
    def _():
        acc_ref[...] = jnp.zeros_like(acc_ref)

    # bf16 operands hit the fast MXU path on v6e/v7x (and v5e's bf16 MXUs);
    # accumulation stays in f32.
    acc_ref[...] += jnp.dot(
        x_ref[...].astype(mxu_dtype),
        w_ref[...].astype(mxu_dtype),
        preferred_element_type=jnp.float32,
    )

    @pl.when(k == pl.num_programs(2) - 1)
    def _():
        o_ref[...] = (acc_ref[...] + b_ref[...].astype(jnp.float32)).astype(o_ref.dtype)


def pallas_linear(x2d, w, b, *, mxu_dtype=jnp.bfloat16, tm=None, tn=None, tk=None):
    cfg = _hw_config()
    M, K = x2d.shape
    N = w.shape[1]
    tm = _pick_tile(M, tm or cfg["lin_tm"])
    tn = _pick_tile(N, tn or cfg["lin_tn"])
    tk = _pick_tile(K, tk or cfg["lin_tk"])
    grid = (M // tm, N // tn, K // tk)

    itemsize = jnp.dtype(x2d.dtype).itemsize
    cost = pl.CostEstimate(
        flops=2 * M * N * K,
        transcendentals=0,
        # x re-read once per N tile, w re-read once per M tile, out written once.
        bytes_accessed=itemsize * (M * K * (N // tn) + K * N * (M // tm) + M * N + N),
    )

    kernel = functools.partial(_linear_kernel, mxu_dtype=mxu_dtype)
    return pl.pallas_call(
        kernel,
        out_shape=jax.ShapeDtypeStruct((M, N), x2d.dtype),
        grid_spec=pltpu.PrefetchScalarGridSpec(
            num_scalar_prefetch=0,
            grid=grid,
            in_specs=[
                pl.BlockSpec((tm, tk), lambda i, j, k: (i, k)),
                pl.BlockSpec((tk, tn), lambda i, j, k: (k, j)),
                pl.BlockSpec((1, tn), lambda i, j, k: (0, j)),
            ],
            out_specs=pl.BlockSpec((tm, tn), lambda i, j, k: (i, j)),
            scratch_shapes=[pltpu.VMEM((tm, tn), jnp.float32)],
        ),
        compiler_params=pltpu.CompilerParams(
            dimension_semantics=("parallel", "parallel", "arbitrary"),
            vmem_limit_bytes=cfg["vmem_limit"],
        ),
        cost_estimate=cost,
    )(x2d, w, b.reshape(1, N))


# ----------------------------------------------------------------------------
# Kernel 2: causal flash attention, lower-triangular flattened (qi, ki) grid
# ----------------------------------------------------------------------------
def _flash_attn_kernel(qi_ref, ki_ref, q_ref, k_ref, v_ref, o_ref,
                       q_sc, m_sc, l_sc, acc_sc, *, scale, tq, tkv, mxu_dtype):
    t = pl.program_id(2)
    qi = qi_ref[t]
    ki = ki_ref[t]

    @pl.when(ki == 0)
    def _():
        # New Q tile: reset the online-softmax state and stage the (scaled) Q
        # once so the 1/sqrt(D) multiply is not repeated on every KV step.
        m_sc[...] = jnp.full_like(m_sc, -jnp.inf)
        l_sc[...] = jnp.zeros_like(l_sc)
        acc_sc[...] = jnp.zeros_like(acc_sc)
        q = q_ref[...].astype(jnp.float32)
        if scale:
            q = q * (1.0 / math.sqrt(q.shape[-1]))
        q_sc[...] = q.astype(q_sc.dtype)

    # s = q @ k^T without materializing a transposed copy of k (bf16 operands,
    # f32 accumulation).
    s = lax.dot_general(
        q_sc[...], k_ref[...].astype(mxu_dtype),
        dimension_numbers=(((1,), (1,)), ((), ())),
        preferred_element_type=jnp.float32,
    )  # (tq, tkv)

    # GPT-2 causal bias  w*b - 10000*(1-b)  ==  where(col <= row, w, -1e4).
    # Only tiles that touch the diagonal need the select; fully-below-diagonal
    # tiles skip the two iotas + compare + where entirely.
    def _apply_mask():
        row = qi * tq + lax.broadcasted_iota(jnp.int32, (tq, tkv), 0)
        col = ki * tkv + lax.broadcasted_iota(jnp.int32, (tq, tkv), 1)
        return jnp.where(col <= row, s, -10000.0)

    s = lax.cond((ki + 1) * tkv > qi * tq, _apply_mask, lambda: s)

    # Online softmax update (f32 math on the VPU).
    m_prev = m_sc[...]
    m_new = jnp.maximum(m_prev, jnp.max(s, axis=-1, keepdims=True))
    alpha = jnp.exp(m_prev - m_new)
    p = jnp.exp(s - m_new)
    l_sc[...] = alpha * l_sc[...] + jnp.sum(p, axis=-1, keepdims=True)
    acc_sc[...] = alpha * acc_sc[...] + jnp.dot(
        p.astype(mxu_dtype), v_ref[...].astype(mxu_dtype),
        preferred_element_type=jnp.float32,
    )
    m_sc[...] = m_new

    # Last KV tile for this Q tile -> normalize and store. Exact reciprocal:
    # it runs once per Q tile, so the approx version buys nothing.
    @pl.when((ki + 1) * tkv >= (qi + 1) * tq)
    def _():
        inv_l = pl.reciprocal(l_sc[...], approx=False)
        o_ref[...] = (acc_sc[...] * inv_l).astype(o_ref.dtype)


def pallas_attention(q, k, v, scale, *, mxu_dtype=jnp.bfloat16, tq=None, tkv=None):
    B, H, S, D = q.shape
    cfg = _hw_config()
    tq = _pick_tile(S, tq or cfg["attn_tq"])
    tkv = _pick_tile(tq, tkv or cfg["attn_tkv"])   # divides tq (and hence S)
    nq = S // tq

    # Flattened lower-triangular (qi, ki) schedule: no dead above-diagonal
    # grid steps.  The kernel / index_maps read qi/ki from scalar-prefetched
    # SMEM arrays.
    qi_ids, ki_ids = [], []
    for qi in range(nq):
        for ki in range((qi + 1) * tq // tkv):
            qi_ids.append(qi)
            ki_ids.append(ki)
    n_steps = len(qi_ids)
    qi_ids = jnp.asarray(qi_ids, jnp.int32)
    ki_ids = jnp.asarray(ki_ids, jnp.int32)

    kernel = functools.partial(_flash_attn_kernel, scale=scale, tq=tq, tkv=tkv,
                               mxu_dtype=mxu_dtype)

    q_spec = pl.BlockSpec((None, None, tq, D),
                          lambda b, h, t, qi_m, ki_m: (b, h, qi_m[t], 0))
    kv_spec = pl.BlockSpec((None, None, tkv, D),
                           lambda b, h, t, qi_m, ki_m: (b, h, ki_m[t], 0))
    out_spec = pl.BlockSpec((None, None, tq, D),
                            lambda b, h, t, qi_m, ki_m: (b, h, qi_m[t], 0))

    itemsize = jnp.dtype(q.dtype).itemsize
    cost = pl.CostEstimate(
        flops=4 * B * H * n_steps * tq * tkv * D,            # QK^T + PV (causal)
        transcendentals=B * H * n_steps * tq * tkv,          # exp
        bytes_accessed=itemsize * B * H * (2 * S * D         # Q read + O written
                                           + 2 * n_steps * tkv * D),  # K,V streamed
    )

    return pl.pallas_call(
        kernel,
        out_shape=jax.ShapeDtypeStruct((B, H, S, D), q.dtype),
        grid_spec=pltpu.PrefetchScalarGridSpec(
            num_scalar_prefetch=2,
            grid=(B, H, n_steps),
            in_specs=[q_spec, kv_spec, kv_spec],
            out_specs=out_spec,
            scratch_shapes=[
                pltpu.VMEM((tq, D), mxu_dtype),    # staged (scaled) Q tile
                pltpu.VMEM((tq, 1), jnp.float32),  # running max
                pltpu.VMEM((tq, 1), jnp.float32),  # running sum
                pltpu.VMEM((tq, D), jnp.float32),  # output accumulator
            ],
        ),
        compiler_params=pltpu.CompilerParams(
            dimension_semantics=("parallel", "parallel", "arbitrary"),
            vmem_limit_bytes=cfg["vmem_limit"],
        ),
        cost_estimate=cost,
    )(qi_ids, ki_ids, q, k, v)


# ----------------------------------------------------------------------------
# Full forward (glue in plain JAX: reshape / head split-merge / present stack)
# ----------------------------------------------------------------------------
def gpt2_attention_forward(x, params, n_head, scale=True, mxu_dtype=jnp.bfloat16):
    B, S, nx = x.shape
    hd = nx // n_head

    # c_attn (tiled Pallas linear)
    qkv = pallas_linear(x.reshape(B * S, nx), params["c_attn_w"], params["c_attn_b"],
                        mxu_dtype=mxu_dtype)
    # (B*S, 3*nx) -> (3, B, H, S, D) with a single fused transpose (the 3*nx
    # columns are laid out as (3, H, D) row-major, so this is split+split_heads).
    qkv = qkv.reshape(B, S, 3, n_head, hd).transpose(2, 0, 3, 1, 4)
    q, k, v = qkv[0], qkv[1], qkv[2]

    # present = stack((key.transpose(-2,-1), value)); torch key is (B,H,D,S),
    # so key.transpose(-2,-1) == our (B,H,S,D) k.
    present = jnp.stack((k, v))  # (2, B, H, S, D)

    # attention core (causal flash Pallas kernel)
    a = pallas_attention(q, k, v, scale, mxu_dtype=mxu_dtype)  # (B, H, S, D)

    # merge heads + c_proj
    a = a.transpose(0, 2, 1, 3).reshape(B * S, nx)
    a = pallas_linear(a, params["c_proj_w"], params["c_proj_b"], mxu_dtype=mxu_dtype)
    a = a.reshape(B, S, nx)

    # attn_dropout / resid_dropout: identity (eval mode)
    return a, present


# ----------------------------------------------------------------------------
# Pure-JAX reference (for sanity check)
# ----------------------------------------------------------------------------
def reference_forward(x, params, n_head, scale=True):
    B, S, nx = x.shape
    hd = nx // n_head
    qkv = x @ params["c_attn_w"] + params["c_attn_b"]
    q, k, v = jnp.split(qkv, 3, axis=2)
    sh = lambda t: t.reshape(B, S, n_head, hd).transpose(0, 2, 1, 3)
    q, k, v = sh(q), sh(k), sh(v)
    w = jnp.einsum("bhqd,bhkd->bhqk", q, k)
    if scale:
        w = w / math.sqrt(hd)
    b = jnp.tril(jnp.ones((S, S), jnp.float32))[None, None]
    w = w * b - 10000.0 * (1 - b)
    w = jax.nn.softmax(w, axis=-1)
    a = jnp.einsum("bhqk,bhkd->bhqd", w, v)
    a = a.transpose(0, 2, 1, 3).reshape(B, S, nx)
    a = a @ params["c_proj_w"] + params["c_proj_b"]
    return a, jnp.stack((k, v))


if __name__ == "__main__":
    # Small GPT-2-like config: hidden=32, heads=4, seq=8, batch=2, scale=True
    B, S, nx, n_head = 2, 8, 32, 4

    key = jax.random.PRNGKey(0)
    k1, k2, k3 = jax.random.split(key, 3)

    params = {
        # Conv1D init in transformers: weight ~ N(0, 0.02), bias = 0
        "c_attn_w": (0.02 * jax.random.normal(k1, (nx, 3 * nx))).astype(jnp.float32),
        "c_attn_b": jnp.zeros((3 * nx,), jnp.float32),
        "c_proj_w": (0.02 * jax.random.normal(k2, (nx, nx))).astype(jnp.float32),
        "c_proj_b": jnp.zeros((nx,), jnp.float32),
    }
    x = jax.random.normal(k3, (B, S, nx), dtype=jnp.float32)

    a_ref, present_ref = reference_forward(x, params, n_head, scale=True)

    # Default fast path: bf16 MXU operands, f32 accumulation.
    a, present = gpt2_attention_forward(x, params, n_head, scale=True)
    jax.block_until_ready((a, present))
    assert a.shape == (B, S, nx)
    assert present.shape == (2, B, n_head, S, nx // n_head)
    assert jnp.allclose(a, a_ref, atol=2e-2, rtol=2e-2), "bf16 path: a mismatch"
    assert jnp.allclose(present, present_ref, atol=1e-2, rtol=1e-2), "bf16 path: present mismatch"

    # Exact path (f32 MXU operands) for a tight semantic check.
    a32, present32 = gpt2_attention_forward(x, params, n_head, scale=True,
                                            mxu_dtype=jnp.float32)
    jax.block_until_ready((a32, present32))
    assert jnp.allclose(a32, a_ref, atol=2e-3, rtol=2e-3), "f32 path: a mismatch"
    assert jnp.allclose(present32, present_ref, atol=1e-4, rtol=1e-4), "f32 path: present mismatch"

    print("KERNEL_OK")
</pallas_src>

<mosaic_0001>
module attributes {stable_mosaic.version = 11 : i64} {
  func.func @_linear_kernel(%arg0: i32, %arg1: i32, %arg2: i32, %arg3: memref<16x32xf32, #tpu.memory_space<vmem>>, %arg4: memref<32x96xf32, #tpu.memory_space<vmem>>, %arg5: memref<1x96xf32, #tpu.memory_space<vmem>>, %arg6: memref<16x96xf32, #tpu.memory_space<vmem>>, %arg7: memref<16x96xf32, #tpu.memory_space<vmem>>) attributes {dimension_semantics = [#tpu.dimension_semantics<parallel>, #tpu.dimension_semantics<parallel>, #tpu.dimension_semantics<arbitrary>], iteration_bounds = array<i64: 1, 1, 1>, scalar_prefetch = 0 : i64, scratch_operands = 1 : i64, tpu.core_type = #tpu.core_type<tc>, window_params = [{transform_indices = @transform_0, window_bounds = array<i64: 16, 32>}, {transform_indices = @transform_1, window_bounds = array<i64: 32, 96>}, {transform_indices = @transform_2, window_bounds = array<i64: 1, 96>}, {transform_indices = @transform_3, window_bounds = array<i64: 16, 96>}]} {
    %c0_i32 = arith.constant 0 : i32
    %0 = arith.cmpi eq, %arg2, %c0_i32 : i32
    %1 = arith.extui %0 : i1 to i32
    %c0_i32_0 = arith.constant 0 : i32
    %2 = arith.cmpi ne, %1, %c0_i32_0 : i32
    scf.if %2 {
      %cst_10 = arith.constant 0.000000e+00 : f32
      %14 = vector.broadcast %cst_10 : f32 to vector<16x96xf32>
      %c0_11 = arith.constant 0 : index
      %c0_12 = arith.constant 0 : index
      %15 = vector.load %arg7[%c0_11, %c0_12] : memref<16x96xf32, #tpu.memory_space<vmem>>, vector<16x96xf32>
      tpu.vector_store %arg7[%c0_11, %c0_12], %14 {strides = array<i32>} : memref<16x96xf32, #tpu.memory_space<vmem>>, vector<16x96xf32>,
    } else {
    }
    %c0 = arith.constant 0 : index
    %c0_1 = arith.constant 0 : index
    %3 = vector.load %arg7[%c0, %c0_1] : memref<16x96xf32, #tpu.memory_space<vmem>>, vector<16x96xf32>
    %c0_2 = arith.constant 0 : index
    %c0_3 = arith.constant 0 : index
    %4 = vector.load %arg3[%c0_2, %c0_3] : memref<16x32xf32, #tpu.memory_space<vmem>>, vector<16x32xf32>
    %5 = arith.truncf %4 : vector<16x32xf32> to vector<16x32xbf16>
    %c0_4 = arith.constant 0 : index
    %c0_5 = arith.constant 0 : index
    %6 = vector.load %arg4[%c0_4, %c0_5] : memref<32x96xf32, #tpu.memory_space<vmem>>, vector<32x96xf32>
    %7 = arith.truncf %6 : vector<32x96xf32> to vector<32x96xbf16>
    %cst = arith.constant dense<0.000000e+00> : vector<16x96xf32>
    %8 = tpu.matmul %5, %7, %cst {dimension_numbers = #tpu.dot_dimension_numbers<[1], [0], [0], [1], [0, 0, 1, 1], [], []>} : vector<16x32xbf16>, vector<32x96xbf16>, vector<16x96xf32> -> vector<16x96xf32>
    %9 = arith.addf %3, %8 : vector<16x96xf32>
    %c0_6 = arith.constant 0 : index
    %c0_7 = arith.constant 0 : index
    %10 = vector.load %arg7[%c0_6, %c0_7] : memref<16x96xf32, #tpu.memory_space<vmem>>, vector<16x96xf32>
    tpu.vector_store %arg7[%c0_6, %c0_7], %9 {strides = array<i32>} : memref<16x96xf32, #tpu.memory_space<vmem>>, vector<16x96xf32>,
    %c0_i32_8 = arith.constant 0 : i32
    %11 = arith.cmpi eq, %arg2, %c0_i32_8 : i32
    %12 = arith.extui %11 : i1 to i32
    %c0_i32_9 = arith.constant 0 : i32
    %13 = arith.cmpi ne, %12, %c0_i32_9 : i32
    scf.if %13 {
      %c0_10 = arith.constant 0 : index
      %c0_11 = arith.constant 0 : index
      %14 = vector.load %arg7[%c0_10, %c0_11] : memref<16x96xf32, #tpu.memory_space<vmem>>, vector<16x96xf32>
      %c0_12 = arith.constant 0 : index
      %c0_13 = arith.constant 0 : index
      %15 = vector.load %arg5[%c0_12, %c0_13] : memref<1x96xf32, #tpu.memory_space<vmem>>, vector<1x96xf32>
      %16 = vector.broadcast %15 : vector<1x96xf32> to vector<16x96xf32>
      %17 = arith.addf %14, %16 : vector<16x96xf32>
      %c0_14 = arith.constant 0 : index
      %c0_15 = arith.constant 0 : index
      %18 = vector.load %arg6[%c0_14, %c0_15] : memref<16x96xf32, #tpu.memory_space<vmem>>, vector<16x96xf32>
      tpu.vector_store %arg6[%c0_14, %c0_15], %17 {strides = array<i32>} : memref<16x96xf32, #tpu.memory_space<vmem>>, vector<16x96xf32>,
    } else {
    }
    return
  }
  func.func @transform_0(%arg0: i32, %arg1: i32, %arg2: i32) -> (i32, i32) {
    %c0_i32 = arith.constant 0 : i32
    return %arg0, %arg2 : i32, i32
  }
  func.func @transform_1(%arg0: i32, %arg1: i32, %arg2: i32) -> (i32, i32) {
    %c0_i32 = arith.constant 0 : i32
    return %arg2, %arg1 : i32, i32
  }
  func.func @transform_2(%arg0: i32, %arg1: i32, %arg2: i32) -> (i32, i32) {
    %c0_i32 = arith.constant 0 : i32
    %c0_i32_0 = arith.constant 0 : i32
    return %c0_i32, %arg1 : i32, i32
  }
  func.func @transform_3(%arg0: i32, %arg1: i32, %arg2: i32) -> (i32, i32) {
    %c0_i32 = arith.constant 0 : i32
    return %arg0, %arg1 : i32, i32
  }
}

</mosaic_0001>

<llo_original>
// kernel: tpu_custom_call.1
$region0: #{tpu_custom_call.1}
  #allocation0 [shape = 'u32[]', space=smem, size = 0x4, offset = 0x4, fixed_abs, tag = 'smem constant byte address 0x4 - core index']
  #allocation1 [shape = 'u32[144,128]{1,0:T(1,128)}', space=vmem, size = 0x12000, scoped, tag = 'internal scratch']
  #allocation2 [shape = 'f32[16,96]{1,0:T(8,128)}', space=vmem, size = 0x2000, scoped, tag = 'scratch operand']
  %s0 = inlined_call_operand.hbm [shape: f32[16,32], index: 0, kind: input, shape index: {}]
  %s1 = inlined_call_operand.hbm [shape: f32[32,96], index: 1, kind: input, shape index: {}]
  %s2 = inlined_call_operand.vmem [shape: f32[1,96], index: 2, kind: input, shape index: {}]
  %s3 = inlined_call_operand.hbm [shape: f32[16,96], index: 3, kind: output, shape index: {}]
  %s4 = sld [smem:[#allocation0]]
  $region38: #{tpu_custom_call.1} parent=0
    _
  %s6 = ssub.s32 1, %s4
  %s7 = scalar_select 0, %s6, %s4
  $region1: #{tpu_custom_call.1} parent=0
    #allocation3 [shape = 'u8[8192]{0}', space=vmem, size = 0x2000, scoped, tag = 'input window, operand 0, single buffered']
    #allocation4 [shape = 's32[1]{0}', space=sflag, size = 0x4, scoped, tag = 'scoped memory for tpu_custom_call.1']
    #allocation5 [shape = 's32[1]{0}', space=sflag, size = 0x4, scoped, tag = 'scoped memory for tpu_custom_call.1']
    #allocation6 [shape = 'u8[16384]{0}', space=vmem, size = 0x4000, scoped, tag = 'input window, operand 1, single buffered']
    #allocation7 [shape = 's32[1]{0}', space=sflag, size = 0x4, scoped, tag = 'scoped memory for tpu_custom_call.1']
    #allocation8 [shape = 'u8[8192]{0}', space=vmem, size = 0x2000, scoped, tag = 'output window, operand 0, single buffered']
    %8 = vsyncpa [#allocation4], 0
    %9 = vsyncpa [#allocation7], 0
    %10 = vsyncpa [#allocation5], 0
    // Predicated region
    $region2: #{tpu_custom_call.1} parent=1 // pred_check
      _
    $region3: #{tpu_custom_call.1} parent=1 // pred_check_branch
      %12 = sbr.rel (0) target = $region5
    $region4: #{tpu_custom_call.1} parent=1 // pred_region
      %s14 = ssub.s32 256, 256
      %15 = vsyncadd [#allocation4], %s14
      %s16 = sshll.u32 [#allocation3], 4
      %s17 = int_to_ptr.vmem [resolvable:$true] %s16
      %22 = dma.hbm_to_vmem [thread:$0]  %s0, 256, %s17, [#allocation4], 128, 128, 8
    $region5: #{tpu_custom_call.1} parent=1 // pred_fallthru
      _
    // Predicated region
    $region6: #{tpu_custom_call.1} parent=1 // pred_check
      _
    $region7: #{tpu_custom_call.1} parent=1 // pred_check_branch
      %24 = sbr.rel (0) target = $region9
    $region8: #{tpu_custom_call.1} parent=1 // pred_region
      %s26 = ssub.s32 512, 512
      %27 = vsyncadd [#allocation7], %s26
      %s28 = sshll.u32 [#allocation6], 4
      %s29 = int_to_ptr.vmem [resolvable:$true] %s28
      %34 = dma.hbm_to_vmem [thread:$0]  %s1, 512, %s29, [#allocation7], 128, 128, 8
    $region9: #{tpu_custom_call.1} parent=1 // pred_fallthru
      _
    // Predicated region
    $region10: #{tpu_custom_call.1} parent=1 // pred_check
      _
    $region11: #{tpu_custom_call.1} parent=1 // pred_check_branch
      %36 = sbr.rel (0) target = $region13
    $region12: #{tpu_custom_call.1} parent=1 // pred_region
      _
    $region13: #{tpu_custom_call.1} parent=1 // pred_fallthru
      _
    // Predicated region
    $region14: #{tpu_custom_call.1} parent=1 // pred_check
      _
    $region15: #{tpu_custom_call.1} parent=1 // pred_check_branch
      %38 = sbr.rel (0) target = $region17
    $region16: #{tpu_custom_call.1} parent=1 // pred_region
      %39 = dma.done [#allocation4], 256
    $region17: #{tpu_custom_call.1} parent=1 // pred_fallthru
      _
    // Predicated region
    $region18: #{tpu_custom_call.1} parent=1 // pred_check
      _
    $region19: #{tpu_custom_call.1} parent=1 // pred_check_branch
      %41 = sbr.rel (0) target = $region21
    $region20: #{tpu_custom_call.1} parent=1 // pred_region
      %42 = dma.done [#allocation7], 512
    $region21: #{tpu_custom_call.1} parent=1 // pred_fallthru
      _
    %p44 = scmp.eq.s32.totalorder 0, 0
    // Predicated region
    $region22: #{tpu_custom_call.1} parent=1 // pred_check
      %p45 = pneg %p44
    $region23: #{tpu_custom_call.1} parent=1 // pred_check_branch
      %47 = sbr.rel (%p45) target = $region25
    $region24: #{tpu_custom_call.1} parent=1 // pred_region
      %vm48 = vcmask 785408
      %49 = vst.msk [vmem:[#allocation2] sm:$0xff] %vm48, 0.0
      %50 = vst.msk [vmem:[#allocation2 + $0x8] sm:$0xff] %vm48, 0.0
    $region25: #{tpu_custom_call.1} parent=1 // pred_fallthru
      _
    %v51 = vld [vmem:[#allocation2] sm:$0xff]
    %v52 = vld [vmem:[#allocation2 + $0x8] sm:$0xff]
    %v53 = vld [vmem:[#allocation3] sm:$0xff]
    %v54 = vld [vmem:[#allocation3 + $0x8] sm:$0xff]
    %v55 = vpack.c.bf16 %v54, %v53
    %v56 = vld [vmem:[#allocation6] sm:$0xff]
    %v57 = vld [vmem:[#allocation6 + $0x8] sm:$0xff]
    %v58 = vld [vmem:[#allocation6 + $0x10] sm:$0xff]
    %v59 = vld [vmem:[#allocation6 + $0x18] sm:$0xff]
    %v60 = vpack.c.bf16 %v57, %v56
    %v61 = vpack.c.bf16 %v59, %v58
    %vm62 = vcmask 261120
    %v64 = vsel %vm62, %v55, 0
    %66 = vmatprep.subr.bf16.mxu0 0
    %67 = vmatpush1.bf16.msra.mxu0 %v60
    %68 = vmatprep.subr.bf16.mxu0 0
    %69 = vmatpush1.bf16.msra.mxu0 %v61
    %70 = vmatprep.subr.bf16.mxu0 0
    %71 = vmatpush1.bf16.msra.mxu0 0
    %72 = vmatprep.subr.bf16.mxu0 0
    %73 = vmatpush1.bf16.msra.mxu0 0
    %74 = vmatprep.subr.bf16.mxu0 0
    %75 = vmatpush1.bf16.msra.mxu0 0
    %76 = vmatprep.subr.bf16.mxu0 0
    %77 = vmatpush1.bf16.msra.mxu0 0
    %78 = vmatprep.subr.bf16.mxu0 0
    %79 = vmatpush1.bf16.msra.mxu0 0
    %80 = vmatprep.subr.bf16.mxu0 0
    %81 = vmatpush1.bf16.msra.mxu0 0
    %82 = vmatprep.subr.bf16.mxu0 0
    %83 = vmatpush1.bf16.msra.mxu0 0
    %84 = vmatprep.subr.bf16.mxu0 0
    %85 = vmatpush1.bf16.msra.mxu0 0
    %86 = vmatprep.subr.bf16.mxu0 0
    %87 = vmatpush1.bf16.msra.mxu0 0
    %88 = vmatprep.subr.bf16.mxu0 0
    %89 = vmatpush1.bf16.msra.mxu0 0
    %90 = vmatprep.subr.bf16.mxu0 0
    %91 = vmatpush1.bf16.msra.mxu0 0
    %92 = vmatprep.subr.bf16.mxu0 0
    %93 = vmatpush1.bf16.msra.mxu0 0
    %94 = vmatprep.subr.bf16.mxu0 0
    %95 = vmatpush1.bf16.msra.mxu0 0
    %96 = vmatprep.subr.bf16.mxu0 0
    %97 = vmatpush1.bf16.msra.mxu0 0
    %98 = vmatprep.mubr.bf16.mxu0 0
    %99 = vmatmul.mubr.bf16.gmra.mrb[0].mxu0 %v64
    %v100 = vpop.f32.mrb[0].mxu0
    %v101 = vadd.f32 0.0, %v100
    %v102 = vpop.f32.mrb[0].mxu0
    %v103 = vpop.f32.mrb[0].mxu0
    %v104 = vadd.f32 0.0, %v103
    %v105 = vpop.f32.mrb[0].mxu0
    %106 = vdwg.mxu0
    %v107 = vadd.f32 %v51, %v101
    %v108 = vadd.f32 %v52, %v104
    %vm109 = vcmask 785408
    %110 = vst.msk [vmem:[#allocation2] sm:$0xff] %vm109, %v107
    %111 = vst.msk [vmem:[#allocation2 + $0x8] sm:$0xff] %vm109, %v108
    // Predicated region
    $region26: #{tpu_custom_call.1} parent=1 // pred_check
      %p112 = pneg %p44
    $region27: #{tpu_custom_call.1} parent=1 // pred_check_branch
      %114 = sbr.rel (%p112) target = $region29
    $region28: #{tpu_custom_call.1} parent=1 // pred_region
      %v115 = vld [vmem:[#allocation2] sm:$0xff]
      %v116 = vld [vmem:[#allocation2 + $0x8] sm:$0xff]
      %v117 = vld [vmem:[%s2] sm:$0x1]
      %v119 = vlaneseq
      %v120 = vshrl.u32 %v119, 7
      %v121 = vsub.s32 0, %v120
      %v122 = vrot.slane %v117, %v121
      %v124 = vadd.f32 %v115, %v122
      %v125 = vadd.f32 %v116, %v122
      %126 = vst.msk [vmem:[#allocation8] sm:$0xff] %vm109, %v124
      %127 = vst.msk [vmem:[#allocation8 + $0x8] sm:$0xff] %vm109, %v125
    $region29: #{tpu_custom_call.1} parent=1 // pred_fallthru
      _
    // Predicated region
    $region30: #{tpu_custom_call.1} parent=1 // pred_check
      _
    $region31: #{tpu_custom_call.1} parent=1 // pred_check_branch
      %129 = sbr.rel (0) target = $region33
    $region32: #{tpu_custom_call.1} parent=1 // pred_region
      %s131 = ssub.s32 256, 256
      %132 = vsyncadd [#allocation5], %s131
      %s133 = sshll.u32 [#allocation8], 4
      %s134 = int_to_ptr.vmem [resolvable:$true] %s133
      %139 = dma.vmem_to_hbm [thread:$0]  %s134, 256, %s3, [#allocation5], 128, 128, 8
    $region33: #{tpu_custom_call.1} parent=1 // pred_fallthru
      _
    // Predicated region
    $region34: #{tpu_custom_call.1} parent=1 // pred_check
      _
    $region35: #{tpu_custom_call.1} parent=1 // pred_check_branch
      %141 = sbr.rel (0) target = $region37
    $region36: #{tpu_custom_call.1} parent=1 // pred_region
      %142 = dma.done [#allocation5], 256
    $region37: #{tpu_custom_call.1} parent=1 // pred_fallthru
      _
    %143 = vsyncpa [#allocation4], 1
    %144 = vsyncpa [#allocation7], 1
    %145 = vsyncpa [#allocation5], 1

</llo_original>
